<compile_context>
chip_gen: v5e
topology: v5e:2x2
jax: 0.10.0
libtpu: 0.0.40
codegen_flags: <defaults>
</compile_context>

<pallas_src>
import numpy as np
import jax
import jax.numpy as jnp
from jax.experimental import pallas as pl
from jax.experimental.pallas import tpu as pltpu

# ----- small, module-consistent configuration -----
N = 32                       # dihedral "n"  -> regular rep dim 2n = 64
CIN = 2
COUT = 2
GENERATORS = [(0, 1), (1, 0)]
G = len(GENERATORS)
T = 10
BATCH = 8
D_IN = 2 * N * CIN           # 128
D_OUT = 2 * N * COUT         # 128 (antisymmetrization requires D_IN == D_OUT)


def dihedral_permutation_matrix_right(n, a, b):
    P_rot = np.zeros((2 * n, 2 * n), dtype=np.float32)
    for i in range(n):
        P_rot[i, (i + b) % n] = 1.0
        P_rot[i + n, n + (i + b) % n] = 1.0
    P_refl = np.zeros((2 * n, 2 * n), dtype=np.float32)
    for i in range(n):
        P_refl[i, n + (-i) % n] = 1.0
        P_refl[i + n, (-i) % n] = 1.0
    return P_rot if a == 0 else P_rot @ P_refl


def _kernel(f_ref, x_ref, o_ref):
    """f_ref: (D_IN, D_OUT) antisymmetric filter (VMEM, resident across grid);
    x_ref: (BB, D_IN) batch tile; o_ref: (BB, D_OUT) output tile."""
    F = f_ref[...]
    z = x_ref[...]
    curr = z
    # Truncated matrix-exponential action: fully unrolled serial matmul chain
    # (static unroll with trace-time reciprocals keeps the chain visible to the
    # LLO scheduler and avoids a per-iteration divide).
    for i in range(1, T + 1):
        curr = jnp.dot(curr, F, preferred_element_type=jnp.float32) * (1.0 / float(i))
        z = z + curr
    o_ref[...] = z


@jax.jit
def dihedral_group_conv_unitary(x, perm, weight):
    b = x.shape[0]
    x2d = x.reshape(b, D_IN).astype(jnp.float32)

    # Filter build + antisymmetrization: tiny (128x128), done in plain XLA so
    # the kernel contains only the serial matmul chain.
    filt = jnp.einsum(
        'gio,gcd->cido', perm.astype(jnp.float32), weight.astype(jnp.float32)
    ).reshape(D_IN, D_OUT)
    filt = 0.5 * (filt - filt.T)

    # Batch tiling: 256-row tiles for large batches (fills the 256x256 MXU and
    # lets v7x's two TensorCores split the "parallel" axis); otherwise a single
    # sublane-aligned tile covering the whole (padded) batch.
    if b >= 256:
        bb = 256
    else:
        bb = max(8, -(-b // 8) * 8)          # round batch up to a multiple of 8
    b_pad = -(-b // bb) * bb
    if b_pad != b:
        x2d = jnp.pad(x2d, ((0, b_pad - b), (0, 0)))
    grid = (b_pad // bb,)

    out2d = pl.pallas_call(
        _kernel,
        out_shape=jax.ShapeDtypeStruct((b_pad, D_OUT), jnp.float32),
        grid=grid,
        in_specs=[
            pl.BlockSpec((D_IN, D_OUT), lambda i: (0, 0)),   # filter: resident
            pl.BlockSpec((bb, D_IN), lambda i: (i, 0)),      # x: batch-tiled
        ],
        out_specs=pl.BlockSpec((bb, D_OUT), lambda i: (i, 0)),
        compiler_params=pltpu.CompilerParams(
            dimension_semantics=("parallel",)),
        cost_estimate=pl.CostEstimate(
            flops=2 * T * b_pad * D_IN * D_OUT,
            transcendentals=0,
            bytes_accessed=4 * (b_pad * D_IN + D_IN * D_OUT + b_pad * D_OUT)),
    )(filt, x2d)

    return out2d[:b].reshape(b, COUT, 2 * N)


def reference(x, perm, weight):
    """Pure-JAX reference, mirroring the PyTorch forward line-by-line."""
    b = x.shape[0]
    filt = jnp.einsum('gio,gcd->cido', perm, weight).reshape(D_IN, D_OUT)
    filt = 0.5 * (filt - filt.T)
    z = x.reshape(b, -1)
    curr = z
    for i in range(1, T + 1):
        curr = curr @ filt / float(i)
        z = z + curr
    return z.reshape(b, COUT, 2 * N)


if __name__ == "__main__":
    # Deterministic parameter init (kaiming_uniform_ with a=sqrt(2), bias unused).
    key = jax.random.PRNGKey(0)
    k_w, k_x = jax.random.split(key)

    fan_in = CIN * COUT                       # torch fan_in for (G, Cin, Cout)
    gain = np.sqrt(2.0 / (1.0 + 2.0))         # a = sqrt(2)
    bound = gain * np.sqrt(3.0 / fan_in)
    weight = jax.random.uniform(k_w, (G, CIN, COUT), jnp.float32, -bound, bound)

    perm = jnp.asarray(
        np.stack([dihedral_permutation_matrix_right(N, a, b) for a, b in GENERATORS]),
        dtype=jnp.float32,
    )

    x = jax.random.normal(k_x, (BATCH, CIN, 2 * N), dtype=jnp.float32)

    out = jax.block_until_ready(dihedral_group_conv_unitary(x, perm, weight))
    ref = jax.block_until_ready(reference(x, perm, weight))

    np.testing.assert_allclose(np.asarray(out), np.asarray(ref), rtol=1e-2, atol=1e-2)
    assert out.shape == (BATCH, COUT, 2 * N)

    print("KERNEL_OK")
</pallas_src>

<mosaic_0001>
module attributes {stable_mosaic.version = 11 : i64} {
  func.func @_kernel(%arg0: i32, %arg1: memref<128x128xf32, #tpu.memory_space<vmem>>, %arg2: memref<8x128xf32, #tpu.memory_space<vmem>>, %arg3: memref<8x128xf32, #tpu.memory_space<vmem>>) attributes {dimension_semantics = [#tpu.dimension_semantics<parallel>], iteration_bounds = array<i64: 1>, scalar_prefetch = 0 : i64, scratch_operands = 0 : i64, tpu.core_type = #tpu.core_type<tc>, window_params = [{pipeline_mode = #tpu.pipeline_mode<synchronous>, transform_indices = @transform_0, window_bounds = array<i64: 128, 128>}, {transform_indices = @transform_1, window_bounds = array<i64: 8, 128>}, {transform_indices = @transform_2, window_bounds = array<i64: 8, 128>}]} {
    %c0 = arith.constant 0 : index
    %c0_0 = arith.constant 0 : index
    %0 = vector.load %arg1[%c0, %c0_0] : memref<128x128xf32, #tpu.memory_space<vmem>>, vector<128x128xf32>
    %c0_1 = arith.constant 0 : index
    %c0_2 = arith.constant 0 : index
    %1 = vector.load %arg2[%c0_1, %c0_2] : memref<8x128xf32, #tpu.memory_space<vmem>>, vector<8x128xf32>
    %cst = arith.constant dense<0.000000e+00> : vector<8x128xf32>
    %2 = tpu.matmul %1, %0, %cst {dimension_numbers = #tpu.dot_dimension_numbers<[1], [0], [0], [1], [0, 0, 1, 1], [], []>} : vector<8x128xf32>, vector<128x128xf32>, vector<8x128xf32> -> vector<8x128xf32>
    %cst_3 = arith.constant 1.000000e+00 : f32
    %3 = vector.broadcast %cst_3 : f32 to vector<8x128xf32>
    %4 = arith.mulf %2, %3 : vector<8x128xf32>
    %5 = arith.addf %1, %4 : vector<8x128xf32>
    %cst_4 = arith.constant dense<0.000000e+00> : vector<8x128xf32>
    %6 = tpu.matmul %4, %0, %cst_4 {dimension_numbers = #tpu.dot_dimension_numbers<[1], [0], [0], [1], [0, 0, 1, 1], [], []>} : vector<8x128xf32>, vector<128x128xf32>, vector<8x128xf32> -> vector<8x128xf32>
    %cst_5 = arith.constant 5.000000e-01 : f32
    %7 = vector.broadcast %cst_5 : f32 to vector<8x128xf32>
    %8 = arith.mulf %6, %7 : vector<8x128xf32>
    %9 = arith.addf %5, %8 : vector<8x128xf32>
    %cst_6 = arith.constant dense<0.000000e+00> : vector<8x128xf32>
    %10 = tpu.matmul %8, %0, %cst_6 {dimension_numbers = #tpu.dot_dimension_numbers<[1], [0], [0], [1], [0, 0, 1, 1], [], []>} : vector<8x128xf32>, vector<128x128xf32>, vector<8x128xf32> -> vector<8x128xf32>
    %cst_7 = arith.constant 0.333333343 : f32
    %11 = vector.broadcast %cst_7 : f32 to vector<8x128xf32>
    %12 = arith.mulf %10, %11 : vector<8x128xf32>
    %13 = arith.addf %9, %12 : vector<8x128xf32>
    %cst_8 = arith.constant dense<0.000000e+00> : vector<8x128xf32>
    %14 = tpu.matmul %12, %0, %cst_8 {dimension_numbers = #tpu.dot_dimension_numbers<[1], [0], [0], [1], [0, 0, 1, 1], [], []>} : vector<8x128xf32>, vector<128x128xf32>, vector<8x128xf32> -> vector<8x128xf32>
    %cst_9 = arith.constant 2.500000e-01 : f32
    %15 = vector.broadcast %cst_9 : f32 to vector<8x128xf32>
    %16 = arith.mulf %14, %15 : vector<8x128xf32>
    %17 = arith.addf %13, %16 : vector<8x128xf32>
    %cst_10 = arith.constant dense<0.000000e+00> : vector<8x128xf32>
    %18 = tpu.matmul %16, %0, %cst_10 {dimension_numbers = #tpu.dot_dimension_numbers<[1], [0], [0], [1], [0, 0, 1, 1], [], []>} : vector<8x128xf32>, vector<128x128xf32>, vector<8x128xf32> -> vector<8x128xf32>
    %cst_11 = arith.constant 2.000000e-01 : f32
    %19 = vector.broadcast %cst_11 : f32 to vector<8x128xf32>
    %20 = arith.mulf %18, %19 : vector<8x128xf32>
    %21 = arith.addf %17, %20 : vector<8x128xf32>
    %cst_12 = arith.constant dense<0.000000e+00> : vector<8x128xf32>
    %22 = tpu.matmul %20, %0, %cst_12 {dimension_numbers = #tpu.dot_dimension_numbers<[1], [0], [0], [1], [0, 0, 1, 1], [], []>} : vector<8x128xf32>, vector<128x128xf32>, vector<8x128xf32> -> vector<8x128xf32>
    %cst_13 = arith.constant 0.166666672 : f32
    %23 = vector.broadcast %cst_13 : f32 to vector<8x128xf32>
    %24 = arith.mulf %22, %23 : vector<8x128xf32>
    %25 = arith.addf %21, %24 : vector<8x128xf32>
    %cst_14 = arith.constant dense<0.000000e+00> : vector<8x128xf32>
    %26 = tpu.matmul %24, %0, %cst_14 {dimension_numbers = #tpu.dot_dimension_numbers<[1], [0], [0], [1], [0, 0, 1, 1], [], []>} : vector<8x128xf32>, vector<128x128xf32>, vector<8x128xf32> -> vector<8x128xf32>
    %cst_15 = arith.constant 0.142857149 : f32
    %27 = vector.broadcast %cst_15 : f32 to vector<8x128xf32>
    %28 = arith.mulf %26, %27 : vector<8x128xf32>
    %29 = arith.addf %25, %28 : vector<8x128xf32>
    %cst_16 = arith.constant dense<0.000000e+00> : vector<8x128xf32>
    %30 = tpu.matmul %28, %0, %cst_16 {dimension_numbers = #tpu.dot_dimension_numbers<[1], [0], [0], [1], [0, 0, 1, 1], [], []>} : vector<8x128xf32>, vector<128x128xf32>, vector<8x128xf32> -> vector<8x128xf32>
    %cst_17 = arith.constant 1.250000e-01 : f32
    %31 = vector.broadcast %cst_17 : f32 to vector<8x128xf32>
    %32 = arith.mulf %30, %31 : vector<8x128xf32>
    %33 = arith.addf %29, %32 : vector<8x128xf32>
    %cst_18 = arith.constant dense<0.000000e+00> : vector<8x128xf32>
    %34 = tpu.matmul %32, %0, %cst_18 {dimension_numbers = #tpu.dot_dimension_numbers<[1], [0], [0], [1], [0, 0, 1, 1], [], []>} : vector<8x128xf32>, vector<128x128xf32>, vector<8x128xf32> -> vector<8x128xf32>
    %cst_19 = arith.constant 0.111111112 : f32
    %35 = vector.broadcast %cst_19 : f32 to vector<8x128xf32>
    %36 = arith.mulf %34, %35 : vector<8x128xf32>
    %37 = arith.addf %33, %36 : vector<8x128xf32>
    %cst_20 = arith.constant dense<0.000000e+00> : vector<8x128xf32>
    %38 = tpu.matmul %36, %0, %cst_20 {dimension_numbers = #tpu.dot_dimension_numbers<[1], [0], [0], [1], [0, 0, 1, 1], [], []>} : vector<8x128xf32>, vector<128x128xf32>, vector<8x128xf32> -> vector<8x128xf32>
    %cst_21 = arith.constant 1.000000e-01 : f32
    %39 = vector.broadcast %cst_21 : f32 to vector<8x128xf32>
    %40 = arith.mulf %38, %39 : vector<8x128xf32>
    %41 = arith.addf %37, %40 : vector<8x128xf32>
    %c0_22 = arith.constant 0 : index
    %c0_23 = arith.constant 0 : index
    %42 = vector.load %arg3[%c0_22, %c0_23] : memref<8x128xf32, #tpu.memory_space<vmem>>, vector<8x128xf32>
    tpu.vector_store %arg3[%c0_22, %c0_23], %41 {strides = array<i32>} : memref<8x128xf32, #tpu.memory_space<vmem>>, vector<8x128xf32>,
    return
  }
  func.func @transform_0(%arg0: i32) -> (i32, i32) {
    %c0_i32 = arith.constant 0 : i32
    %c0_i32_0 = arith.constant 0 : i32
    %c0_i32_1 = arith.constant 0 : i32
    return %c0_i32, %c0_i32_0 : i32, i32
  }
  func.func @transform_1(%arg0: i32) -> (i32, i32) {
    %c0_i32 = arith.constant 0 : i32
    %c0_i32_0 = arith.constant 0 : i32
    return %arg0, %c0_i32 : i32, i32
  }
  func.func @transform_2(%arg0: i32) -> (i32, i32) {
    %c0_i32 = arith.constant 0 : i32
    %c0_i32_0 = arith.constant 0 : i32
    return %arg0, %c0_i32 : i32, i32
  }
}

</mosaic_0001>

<llo_original>
// kernel: dihedral_group_conv_unitary.1
$region0: #{dihedral_group_conv_unitary.1}
  #allocation0 [shape = 'u32[]', space=smem, size = 0x4, offset = 0x4, fixed_abs, tag = 'smem constant byte address 0x4 - core index']
  #allocation1 [shape = 'u32[72,128]{1,0:T(1,128)}', space=vmem, size = 0x9000, scoped, tag = 'internal scratch']
  %s0 = inlined_call_operand.vmem [shape: f32[128,128], index: 0, kind: input, shape index: {}]
  %s1 = inlined_call_operand.vmem [shape: f32[8,128], index: 1, kind: input, shape index: {}]
  %s2 = inlined_call_operand.vmem [shape: f32[8,128], index: 2, kind: output, shape index: {}]
  %s3 = sld [smem:[#allocation0]]
  $region18: #{dihedral_group_conv_unitary.1} parent=0
    _
  %s5 = ssub.s32 1, %s3
  %s6 = scalar_select 0, %s5, %s3
  // Predicated region
  $region2: #{dihedral_group_conv_unitary.1} parent=0 // pred_check
    _
  $region3: #{dihedral_group_conv_unitary.1} parent=0 // pred_check_branch
    %8 = sbr.rel (0) target = $region5
  $region4: #{dihedral_group_conv_unitary.1} parent=0 // pred_region
    _
  $region5: #{dihedral_group_conv_unitary.1} parent=0 // pred_fallthru
    _
  // Predicated region
  $region6: #{dihedral_group_conv_unitary.1} parent=0 // pred_check
    _
  $region7: #{dihedral_group_conv_unitary.1} parent=0 // pred_check_branch
    %10 = sbr.rel (0) target = $region9
  $region8: #{dihedral_group_conv_unitary.1} parent=0 // pred_region
    _
  $region9: #{dihedral_group_conv_unitary.1} parent=0 // pred_fallthru
    _
  %v11 = vld [vmem:[%s0] sm:$0xff]
  %v12 = vld [vmem:[%s0 + $0x8] sm:$0xff]
  %v13 = vld [vmem:[%s0 + $0x10] sm:$0xff]
  %v14 = vld [vmem:[%s0 + $0x18] sm:$0xff]
  %v15 = vld [vmem:[%s0 + $0x20] sm:$0xff]
  %v16 = vld [vmem:[%s0 + $0x28] sm:$0xff]
  %v17 = vld [vmem:[%s0 + $0x30] sm:$0xff]
  %v18 = vld [vmem:[%s0 + $0x38] sm:$0xff]
  %v19 = vld [vmem:[%s0 + $0x40] sm:$0xff]
  %v20 = vld [vmem:[%s0 + $0x48] sm:$0xff]
  %v21 = vld [vmem:[%s0 + $0x50] sm:$0xff]
  %v22 = vld [vmem:[%s0 + $0x58] sm:$0xff]
  %v23 = vld [vmem:[%s0 + $0x60] sm:$0xff]
  %v24 = vld [vmem:[%s0 + $0x68] sm:$0xff]
  %v25 = vld [vmem:[%s0 + $0x70] sm:$0xff]
  %v26 = vld [vmem:[%s0 + $0x78] sm:$0xff]
  %v27 = vld [vmem:[%s1] sm:$0xff]
  %28 = vmatpush.msra.mxu0 %v26
  %29 = vmatpush.msra.mxu0 %v25
  %30 = vmatpush.msra.mxu0 %v24
  %31 = vmatpush.msra.mxu0 %v23
  %32 = vmatpush.msra.mxu0 %v22
  %33 = vmatpush.msra.mxu0 %v21
  %34 = vmatpush.msra.mxu0 %v20
  %35 = vmatpush.msra.mxu0 %v19
  %36 = vmatpush.msra.mxu0 %v18
  %37 = vmatpush.msra.mxu0 %v17
  %38 = vmatpush.msra.mxu0 %v16
  %39 = vmatpush.msra.mxu0 %v15
  %40 = vmatpush.msra.mxu0 %v14
  %41 = vmatpush.msra.mxu0 %v13
  %42 = vmatpush.msra.mxu0 %v12
  %43 = vmatpush.msra.mxu0 %v11
  %44 = vmatmul.f32.gmra.mxu0 %v27
  %v45 = vpop.f32.mrf.mxu0
  %v46 = vadd.f32 0.0, %v45
  %47 = vdwg.mxu0
  %v48 = vadd.f32 %v27, %v46
  %49 = vmatpush.msra.mxu0 %v26
  %50 = vmatpush.msra.mxu0 %v25
  %51 = vmatpush.msra.mxu0 %v24
  %52 = vmatpush.msra.mxu0 %v23
  %53 = vmatpush.msra.mxu0 %v22
  %54 = vmatpush.msra.mxu0 %v21
  %55 = vmatpush.msra.mxu0 %v20
  %56 = vmatpush.msra.mxu0 %v19
  %57 = vmatpush.msra.mxu0 %v18
  %58 = vmatpush.msra.mxu0 %v17
  %59 = vmatpush.msra.mxu0 %v16
  %60 = vmatpush.msra.mxu0 %v15
  %61 = vmatpush.msra.mxu0 %v14
  %62 = vmatpush.msra.mxu0 %v13
  %63 = vmatpush.msra.mxu0 %v12
  %64 = vmatpush.msra.mxu0 %v11
  %65 = vmatmul.f32.gmra.mxu0 %v46
  %v66 = vpop.f32.mrf.mxu0
  %v67 = vadd.f32 0.0, %v66
  %68 = vdwg.mxu0
  %v69 = vmul.f32 %v67, 0.5
  %v70 = vadd.f32 %v48, %v69
  %71 = vmatpush.msra.mxu0 %v26
  %72 = vmatpush.msra.mxu0 %v25
  %73 = vmatpush.msra.mxu0 %v24
  %74 = vmatpush.msra.mxu0 %v23
  %75 = vmatpush.msra.mxu0 %v22
  %76 = vmatpush.msra.mxu0 %v21
  %77 = vmatpush.msra.mxu0 %v20
  %78 = vmatpush.msra.mxu0 %v19
  %79 = vmatpush.msra.mxu0 %v18
  %80 = vmatpush.msra.mxu0 %v17
  %81 = vmatpush.msra.mxu0 %v16
  %82 = vmatpush.msra.mxu0 %v15
  %83 = vmatpush.msra.mxu0 %v14
  %84 = vmatpush.msra.mxu0 %v13
  %85 = vmatpush.msra.mxu0 %v12
  %86 = vmatpush.msra.mxu0 %v11
  %87 = vmatmul.f32.gmra.mxu0 %v69
  %v88 = vpop.f32.mrf.mxu0
  %v89 = vadd.f32 0.0, %v88
  %90 = vdwg.mxu0
  %v91 = vmul.f32 %v89, 0.33333334
  %v92 = vadd.f32 %v70, %v91
  %93 = vmatpush.msra.mxu0 %v26
  %94 = vmatpush.msra.mxu0 %v25
  %95 = vmatpush.msra.mxu0 %v24
  %96 = vmatpush.msra.mxu0 %v23
  %97 = vmatpush.msra.mxu0 %v22
  %98 = vmatpush.msra.mxu0 %v21
  %99 = vmatpush.msra.mxu0 %v20
  %100 = vmatpush.msra.mxu0 %v19
  %101 = vmatpush.msra.mxu0 %v18
  %102 = vmatpush.msra.mxu0 %v17
  %103 = vmatpush.msra.mxu0 %v16
  %104 = vmatpush.msra.mxu0 %v15
  %105 = vmatpush.msra.mxu0 %v14
  %106 = vmatpush.msra.mxu0 %v13
  %107 = vmatpush.msra.mxu0 %v12
  %108 = vmatpush.msra.mxu0 %v11
  %109 = vmatmul.f32.gmra.mxu0 %v91
  %v110 = vpop.f32.mrf.mxu0
  %v111 = vadd.f32 0.0, %v110
  %112 = vdwg.mxu0
  %v113 = vmul.f32 %v111, 0.25
  %v114 = vadd.f32 %v92, %v113
  %115 = vmatpush.msra.mxu0 %v26
  %116 = vmatpush.msra.mxu0 %v25
  %117 = vmatpush.msra.mxu0 %v24
  %118 = vmatpush.msra.mxu0 %v23
  %119 = vmatpush.msra.mxu0 %v22
  %120 = vmatpush.msra.mxu0 %v21
  %121 = vmatpush.msra.mxu0 %v20
  %122 = vmatpush.msra.mxu0 %v19
  %123 = vmatpush.msra.mxu0 %v18
  %124 = vmatpush.msra.mxu0 %v17
  %125 = vmatpush.msra.mxu0 %v16
  %126 = vmatpush.msra.mxu0 %v15
  %127 = vmatpush.msra.mxu0 %v14
  %128 = vmatpush.msra.mxu0 %v13
  %129 = vmatpush.msra.mxu0 %v12
  %130 = vmatpush.msra.mxu0 %v11
  %131 = vmatmul.f32.gmra.mxu0 %v113
  %v132 = vpop.f32.mrf.mxu0
  %v133 = vadd.f32 0.0, %v132
  %134 = vdwg.mxu0
  %v135 = vmul.f32 %v133, 0.2
  %v136 = vadd.f32 %v114, %v135
  %137 = vmatpush.msra.mxu0 %v26
  %138 = vmatpush.msra.mxu0 %v25
  %139 = vmatpush.msra.mxu0 %v24
  %140 = vmatpush.msra.mxu0 %v23
  %141 = vmatpush.msra.mxu0 %v22
  %142 = vmatpush.msra.mxu0 %v21
  %143 = vmatpush.msra.mxu0 %v20
  %144 = vmatpush.msra.mxu0 %v19
  %145 = vmatpush.msra.mxu0 %v18
  %146 = vmatpush.msra.mxu0 %v17
  %147 = vmatpush.msra.mxu0 %v16
  %148 = vmatpush.msra.mxu0 %v15
  %149 = vmatpush.msra.mxu0 %v14
  %150 = vmatpush.msra.mxu0 %v13
  %151 = vmatpush.msra.mxu0 %v12
  %152 = vmatpush.msra.mxu0 %v11
  %153 = vmatmul.f32.gmra.mxu0 %v135
  %v154 = vpop.f32.mrf.mxu0
  %v155 = vadd.f32 0.0, %v154
  %156 = vdwg.mxu0
  %v157 = vmul.f32 %v155, 0.16666667
  %v158 = vadd.f32 %v136, %v157
  %159 = vmatpush.msra.mxu0 %v26
  %160 = vmatpush.msra.mxu0 %v25
  %161 = vmatpush.msra.mxu0 %v24
  %162 = vmatpush.msra.mxu0 %v23
  %163 = vmatpush.msra.mxu0 %v22
  %164 = vmatpush.msra.mxu0 %v21
  %165 = vmatpush.msra.mxu0 %v20
  %166 = vmatpush.msra.mxu0 %v19
  %167 = vmatpush.msra.mxu0 %v18
  %168 = vmatpush.msra.mxu0 %v17
  %169 = vmatpush.msra.mxu0 %v16
  %170 = vmatpush.msra.mxu0 %v15
  %171 = vmatpush.msra.mxu0 %v14
  %172 = vmatpush.msra.mxu0 %v13
  %173 = vmatpush.msra.mxu0 %v12
  %174 = vmatpush.msra.mxu0 %v11
  %175 = vmatmul.f32.gmra.mxu0 %v157
  %v176 = vpop.f32.mrf.mxu0
  %v177 = vadd.f32 0.0, %v176
  %178 = vdwg.mxu0
  %v179 = vmul.f32 %v177, 0.14285715
  %v180 = vadd.f32 %v158, %v179
  %181 = vmatpush.msra.mxu0 %v26
  %182 = vmatpush.msra.mxu0 %v25
  %183 = vmatpush.msra.mxu0 %v24
  %184 = vmatpush.msra.mxu0 %v23
  %185 = vmatpush.msra.mxu0 %v22
  %186 = vmatpush.msra.mxu0 %v21
  %187 = vmatpush.msra.mxu0 %v20
  %188 = vmatpush.msra.mxu0 %v19
  %189 = vmatpush.msra.mxu0 %v18
  %190 = vmatpush.msra.mxu0 %v17
  %191 = vmatpush.msra.mxu0 %v16
  %192 = vmatpush.msra.mxu0 %v15
  %193 = vmatpush.msra.mxu0 %v14
  %194 = vmatpush.msra.mxu0 %v13
  %195 = vmatpush.msra.mxu0 %v12
  %196 = vmatpush.msra.mxu0 %v11
  %197 = vmatmul.f32.gmra.mxu0 %v179
  %v198 = vpop.f32.mrf.mxu0
  %v199 = vadd.f32 0.0, %v198
  %200 = vdwg.mxu0
  %v201 = vmul.f32 %v199, 0.125
  %v202 = vadd.f32 %v180, %v201
  %203 = vmatpush.msra.mxu0 %v26
  %204 = vmatpush.msra.mxu0 %v25
  %205 = vmatpush.msra.mxu0 %v24
  %206 = vmatpush.msra.mxu0 %v23
  %207 = vmatpush.msra.mxu0 %v22
  %208 = vmatpush.msra.mxu0 %v21
  %209 = vmatpush.msra.mxu0 %v20
  %210 = vmatpush.msra.mxu0 %v19
  %211 = vmatpush.msra.mxu0 %v18
  %212 = vmatpush.msra.mxu0 %v17
  %213 = vmatpush.msra.mxu0 %v16
  %214 = vmatpush.msra.mxu0 %v15
  %215 = vmatpush.msra.mxu0 %v14
  %216 = vmatpush.msra.mxu0 %v13
  %217 = vmatpush.msra.mxu0 %v12
  %218 = vmatpush.msra.mxu0 %v11
  %219 = vmatmul.f32.gmra.mxu0 %v201
  %v220 = vpop.f32.mrf.mxu0
  %v221 = vadd.f32 0.0, %v220
  %222 = vdwg.mxu0
  %v223 = vmul.f32 %v221, 0.11111111
  %v224 = vadd.f32 %v202, %v223
  %225 = vmatpush.msra.mxu0 %v26
  %226 = vmatpush.msra.mxu0 %v25
  %227 = vmatpush.msra.mxu0 %v24
  %228 = vmatpush.msra.mxu0 %v23
  %229 = vmatpush.msra.mxu0 %v22
  %230 = vmatpush.msra.mxu0 %v21
  %231 = vmatpush.msra.mxu0 %v20
  %232 = vmatpush.msra.mxu0 %v19
  %233 = vmatpush.msra.mxu0 %v18
  %234 = vmatpush.msra.mxu0 %v17
  %235 = vmatpush.msra.mxu0 %v16
  %236 = vmatpush.msra.mxu0 %v15
  %237 = vmatpush.msra.mxu0 %v14
  %238 = vmatpush.msra.mxu0 %v13
  %239 = vmatpush.msra.mxu0 %v12
  %240 = vmatpush.msra.mxu0 %v11
  %241 = vmatmul.f32.gmra.mxu0 %v223
  %v242 = vpop.f32.mrf.mxu0
  %v243 = vadd.f32 0.0, %v242
  %244 = vdwg.mxu0
  %v245 = vmul.f32 %v243, 0.1
  %v246 = vadd.f32 %v224, %v245
  %247 = vst [vmem:[%s2] sm:$0xff] %v246
  // Predicated region
  $region10: #{dihedral_group_conv_unitary.1} parent=0 // pred_check
    _
  $region11: #{dihedral_group_conv_unitary.1} parent=0 // pred_check_branch
    %249 = sbr.rel (0) target = $region13
  $region12: #{dihedral_group_conv_unitary.1} parent=0 // pred_region
    _
  $region13: #{dihedral_group_conv_unitary.1} parent=0 // pred_fallthru
    _
  // Predicated region
  $region14: #{dihedral_group_conv_unitary.1} parent=0 // pred_check
    _
  $region15: #{dihedral_group_conv_unitary.1} parent=0 // pred_check_branch
    %251 = sbr.rel (0) target = $region17
  $region16: #{dihedral_group_conv_unitary.1} parent=0 // pred_region
    _
  $region17: #{dihedral_group_conv_unitary.1} parent=0 // pred_fallthru
    _

</llo_original>
